<compile_context>
chip_gen: v7x
topology: tpu7x:2x2x1
jax: 0.10.0
libtpu: 0.0.40
codegen_flags: <defaults>
</compile_context>

<pallas_src>
import functools
import math

import jax
import jax.numpy as jnp
from jax import lax
from jax.experimental import pallas as pl
from jax.experimental.pallas import tpu as pltpu


def _cdiv(a, b):
    return -(-a // b)


def _round_up(a, b):
    return _cdiv(a, b) * b


def _default_num_partials():
    """2 per-core partials on multi-TensorCore chips, 1 on v5e/v6e."""
    try:
        kind = jax.devices()[0].device_kind.lower()
    except Exception:
        return 1
    return 2 if any(tag in kind for tag in ("v7", "7x", "v4", "v5p")) else 1


def _vmem_capacity_bytes():
    try:
        return int(pltpu.get_tpu_info().vmem_capacity_bytes)
    except Exception:
        return 64 * 1024 * 1024  # v7x per-TC value = most conservative default


def _gdl_kernel(x_ref, t_ref, out_ref, acc_h_ref, acc_w_ref, *,
                W, L, fold, inv_numel):
    """One grid step: TB flattened planes of L = H*W lanes each."""
    i = pl.program_id(1)

    @pl.when(i == 0)
    def _():
        acc_h_ref[...] = jnp.zeros_like(acc_h_ref)
        acc_w_ref[...] = jnp.zeros_like(acc_w_ref)

    d = x_ref[...].astype(jnp.float32) - t_ref[...].astype(jnp.float32)
    TB = d.shape[0]

    # Neighbour values via static lane rolls (XLU, free slot vs. the VPU):
    #   roll(d, L-1)[:, l] == d[:, (l+1) % L]   -> W-neighbour
    #   roll(d, L-W)[:, l] == d[:, (l+W) % L]   -> H-neighbour
    # Wrapped positions are exactly the ones the end-of-grid masks drop.
    dw = pltpu.roll(d, L - 1, axis=1) - d
    dh = pltpu.roll(d, L - W, axis=1) - d

    ch = dh * dh
    cw = dw * dw
    if fold > 1:
        ar = TB // fold
        # Leading-axis reduction over groups of `ar` consecutive channels:
        # pure VPU vreg adds (tile-aligned when ar == 8), no XLU per step.
        ch = jnp.sum(ch.reshape(fold, ar, L), axis=0)
        cw = jnp.sum(cw.reshape(fold, ar, L), axis=0)
    acc_h_ref[...] += ch
    acc_w_ref[...] += cw

    @pl.when(i == pl.num_programs(1) - 1)
    def _():
        # Grid-invariant wrap masks, built and applied once per core.
        # Position within the plane == lane index of the flat layout.
        pos = lax.broadcasted_iota(jnp.int32, (1, L), 1)
        mask_h = pos < (L - W)            # h < H-1
        mask_w = (pos % W) != (W - 1)     # w < W-1
        total = (jnp.sum(jnp.where(mask_h, acc_h_ref[...], 0.0)) +
                 jnp.sum(jnp.where(mask_w, acc_w_ref[...], 0.0)))
        out_ref[...] = jnp.reshape(total * inv_numel, (1, 1, 1)).astype(
            out_ref.dtype)


def gradient_difference_loss(inputs, targets, *, num_partials=None):
    """Pallas implementation of GradientDifferenceLoss.forward (NCHW)."""
    assert inputs.shape == targets.shape, (inputs.shape, targets.shape)
    N, C, H, W = inputs.shape
    NC, L = N * C, H * W
    numel = N * C * H * W
    itemsize = jnp.dtype(inputs.dtype).itemsize

    # --- lane-packed layout: one flattened (L,) row per channel plane -------
    x = inputs.reshape(NC, L)
    t = targets.reshape(NC, L)

    # --- generation-aware VMEM budget, counting the f32 temporaries ---------
    vmem_cap = _vmem_capacity_bytes()               # 64 MiB (v7x) / 128 MiB
    vmem_limit = min((vmem_cap * 3) // 4, 112 * 1024 * 1024)
    budget = (vmem_limit * 4) // 5                  # headroom for acc/masks
    lanes = _round_up(L, 128)
    per_chan = (2 * 2 * lanes * itemsize            # 2 inputs x double-buffer
                + 5 * lanes * 4)                    # d/rolled/diff/square (f32)
    cap = max(1, budget // per_chan)
    # TODO(synk): add an H-tiled (halo) fallback for planes so large that even
    # a single flattened plane exceeds `cap` (e.g. 2048x2048 f32 on v7x);
    # current blocks always hold whole planes.

    # --- per-core partials: split only on multi-TensorCore chips ------------
    P = _default_num_partials() if num_partials is None else int(num_partials)
    P = max(1, min(P, NC))
    if _cdiv(NC, P) < 8:                            # too little work to split
        P = 1

    # --- channels per grid step (TB): prefer an exact, pad-free tiling ------
    if P == 1 and NC <= cap:
        TB, n_inner = NC, 1                         # one block per core
    else:
        cap8 = max(8, (cap // 8) * 8)
        TB = None
        n_min = _cdiv(NC, P * cap8)
        for ni in range(n_min, 4 * n_min + 1):      # exact fit, no padding
            if NC % (P * ni) == 0:
                tb = NC // (P * ni)
                if tb % 8 == 0 and tb <= cap8:
                    TB, n_inner = tb, ni
                    break
        if TB is None:                              # fall back to padding
            TB = min(cap8, _round_up(_cdiv(NC, P), 8))
            n_inner = _cdiv(NC, P * TB)
    NC_pad = P * n_inner * TB
    if NC_pad != NC:
        # Zero planes contribute nothing; padding the already re-packed 2-D
        # view fuses with that relayout copy (no extra full-tensor HBM pass).
        x = jnp.pad(x, ((0, NC_pad - NC), (0, 0)))
        t = jnp.pad(t, ((0, NC_pad - NC), (0, 0)))

    AR = math.gcd(TB, 8)                            # accumulator rows
    fold = TB // AR

    kernel = functools.partial(_gdl_kernel, W=W, L=L, fold=fold,
                               inv_numel=1.0 / float(numel))

    out = pl.pallas_call(
        kernel,
        out_shape=jax.ShapeDtypeStruct((P, 1, 1), jnp.float32),
        grid_spec=pltpu.PrefetchScalarGridSpec(
            num_scalar_prefetch=0,
            grid=(P, n_inner),
            in_specs=[
                pl.BlockSpec((TB, L), lambda p, i: (p * n_inner + i, 0)),
                pl.BlockSpec((TB, L), lambda p, i: (p * n_inner + i, 0)),
            ],
            out_specs=pl.BlockSpec((1, 1, 1), lambda p, i: (p, 0, 0)),
            scratch_shapes=[
                pltpu.VMEM((AR, L), jnp.float32),   # sum of dh^2 over channels
                pltpu.VMEM((AR, L), jnp.float32),   # sum of dw^2 over channels
            ],
        ),
        compiler_params=pltpu.CompilerParams(
            dimension_semantics=("parallel", "arbitrary"),
            vmem_limit_bytes=int(vmem_limit),
        ),
        cost_estimate=pl.CostEstimate(
            flops=7 * numel,
            transcendentals=0,
            bytes_accessed=2 * numel * itemsize + P * 4,
        ),
    )(x, t)

    # Per-core partials are already scaled by 1/numel.
    return jnp.sum(out)


def _reference(inputs, targets):
    dh = (jnp.diff(inputs, axis=-2) - jnp.diff(targets, axis=-2)) ** 2
    dw = (jnp.diff(inputs, axis=-1) - jnp.diff(targets, axis=-1)) ** 2
    return (dh.sum() + dw.sum()) / inputs.size


if __name__ == "__main__":
    key = jax.random.PRNGKey(0)
    k1, k2 = jax.random.split(key)
    N, C, H, W = 2, 4, 16, 16
    inputs = jax.random.normal(k1, (N, C, H, W), dtype=jnp.float32)
    targets = jax.random.normal(k2, (N, C, H, W), dtype=jnp.float32)

    loss = gradient_difference_loss(inputs, targets)
    loss = jax.block_until_ready(loss)

    ref = _reference(inputs, targets)
    assert jnp.allclose(loss, ref, rtol=1e-5, atol=1e-5), (loss, ref)

    print("KERNEL_OK")
</pallas_src>

<mosaic_0001>
module attributes {stable_mosaic.version = 11 : i64} {
  func.func @_gdl_kernel(%arg0: i32, %arg1: i32, %arg2: memref<8x256xf32, #tpu.memory_space<vmem>>, %arg3: memref<8x256xf32, #tpu.memory_space<vmem>>, %arg4: memref<1x1x1xf32, #tpu.memory_space<vmem>>, %arg5: memref<8x256xf32, #tpu.memory_space<vmem>>, %arg6: memref<8x256xf32, #tpu.memory_space<vmem>>) attributes {dimension_semantics = [#tpu.dimension_semantics<parallel>, #tpu.dimension_semantics<arbitrary>], iteration_bounds = array<i64: 1, 1>, scalar_prefetch = 0 : i64, scratch_operands = 2 : i64, tpu.core_type = #tpu.core_type<tc>, window_params = [{transform_indices = @transform_0, window_bounds = array<i64: 8, 256>}, {transform_indices = @transform_1, window_bounds = array<i64: 8, 256>}, {transform_indices = @transform_2, window_bounds = array<i64: 1, 1, 1>}]} {
    %c0_i32 = arith.constant 0 : i32
    %0 = arith.cmpi eq, %arg1, %c0_i32 : i32
    %1 = arith.extui %0 : i1 to i32
    %c0_i32_0 = arith.constant 0 : i32
    %2 = arith.cmpi ne, %1, %c0_i32_0 : i32
    scf.if %2 {
      %cst = arith.constant 0.000000e+00 : f32
      %21 = vector.broadcast %cst : f32 to vector<8x256xf32>
      %c0_14 = arith.constant 0 : index
      %c0_15 = arith.constant 0 : index
      %22 = vector.load %arg5[%c0_14, %c0_15] : memref<8x256xf32, #tpu.memory_space<vmem>>, vector<8x256xf32>
      tpu.vector_store %arg5[%c0_14, %c0_15], %21 {strides = array<i32>} : memref<8x256xf32, #tpu.memory_space<vmem>>, vector<8x256xf32>,
      %cst_16 = arith.constant 0.000000e+00 : f32
      %23 = vector.broadcast %cst_16 : f32 to vector<8x256xf32>
      %c0_17 = arith.constant 0 : index
      %c0_18 = arith.constant 0 : index
      %24 = vector.load %arg6[%c0_17, %c0_18] : memref<8x256xf32, #tpu.memory_space<vmem>>, vector<8x256xf32>
      tpu.vector_store %arg6[%c0_17, %c0_18], %23 {strides = array<i32>} : memref<8x256xf32, #tpu.memory_space<vmem>>, vector<8x256xf32>,
    } else {
    }
    %c0 = arith.constant 0 : index
    %c0_1 = arith.constant 0 : index
    %3 = vector.load %arg2[%c0, %c0_1] : memref<8x256xf32, #tpu.memory_space<vmem>>, vector<8x256xf32>
    %c0_2 = arith.constant 0 : index
    %c0_3 = arith.constant 0 : index
    %4 = vector.load %arg3[%c0_2, %c0_3] : memref<8x256xf32, #tpu.memory_space<vmem>>, vector<8x256xf32>
    %5 = arith.subf %3, %4 : vector<8x256xf32>
    %c255_i32 = arith.constant 255 : i32
    %6 = tpu.dynamic_rotate %5 by %c255_i32 dim 1 : vector<8x256xf32>, i32 -> vector<8x256xf32>
    %7 = arith.subf %6, %5 : vector<8x256xf32>
    %c240_i32 = arith.constant 240 : i32
    %8 = tpu.dynamic_rotate %5 by %c240_i32 dim 1 : vector<8x256xf32>, i32 -> vector<8x256xf32>
    %9 = arith.subf %8, %5 : vector<8x256xf32>
    %10 = arith.mulf %9, %9 : vector<8x256xf32>
    %11 = arith.mulf %7, %7 : vector<8x256xf32>
    %c0_4 = arith.constant 0 : index
    %c0_5 = arith.constant 0 : index
    %12 = vector.load %arg5[%c0_4, %c0_5] : memref<8x256xf32, #tpu.memory_space<vmem>>, vector<8x256xf32>
    %13 = arith.addf %12, %10 : vector<8x256xf32>
    %c0_6 = arith.constant 0 : index
    %c0_7 = arith.constant 0 : index
    %14 = vector.load %arg5[%c0_6, %c0_7] : memref<8x256xf32, #tpu.memory_space<vmem>>, vector<8x256xf32>
    tpu.vector_store %arg5[%c0_6, %c0_7], %13 {strides = array<i32>} : memref<8x256xf32, #tpu.memory_space<vmem>>, vector<8x256xf32>,
    %c0_8 = arith.constant 0 : index
    %c0_9 = arith.constant 0 : index
    %15 = vector.load %arg6[%c0_8, %c0_9] : memref<8x256xf32, #tpu.memory_space<vmem>>, vector<8x256xf32>
    %16 = arith.addf %15, %11 : vector<8x256xf32>
    %c0_10 = arith.constant 0 : index
    %c0_11 = arith.constant 0 : index
    %17 = vector.load %arg6[%c0_10, %c0_11] : memref<8x256xf32, #tpu.memory_space<vmem>>, vector<8x256xf32>
    tpu.vector_store %arg6[%c0_10, %c0_11], %16 {strides = array<i32>} : memref<8x256xf32, #tpu.memory_space<vmem>>, vector<8x256xf32>,
    %c0_i32_12 = arith.constant 0 : i32
    %18 = arith.cmpi eq, %arg1, %c0_i32_12 : i32
    %19 = arith.extui %18 : i1 to i32
    %c0_i32_13 = arith.constant 0 : i32
    %20 = arith.cmpi ne, %19, %c0_i32_13 : i32
    scf.if %20 {
      %21 = tpu.iota {dimensions = array<i32: 1>} : vector<1x256xi32>
      %c240_i32_14 = arith.constant 240 : i32
      %22 = vector.broadcast %c240_i32_14 : i32 to vector<1x256xi32>
      %23 = arith.cmpi slt, %21, %22 : vector<1x256xi32>
      %c16_i32 = arith.constant 16 : i32
      %c0_i32_15 = arith.constant 0 : i32
      %24 = arith.cmpi eq, %c16_i32, %c0_i32_15 : i32
      %c1_i32 = arith.constant 1 : i32
      %25 = arith.select %24, %c1_i32, %c16_i32 : i32
      %26 = vector.broadcast %25 : i32 to vector<1x256xi32>
      %27 = arith.remsi %21, %26 : vector<1x256xi32>
      %c0_i32_16 = arith.constant 0 : i32
      %28 = vector.broadcast %c0_i32_16 : i32 to vector<1x256xi32>
      %29 = arith.cmpi ne, %27, %28 : vector<1x256xi32>
      %c0_i32_17 = arith.constant 0 : i32
      %30 = vector.broadcast %c0_i32_17 : i32 to vector<1x256xi32>
      %31 = arith.cmpi slt, %27, %30 : vector<1x256xi32>
      %c0_i32_18 = arith.constant 0 : i32
      %32 = arith.cmpi slt, %25, %c0_i32_18 : i32
      %33 = vector.broadcast %32 : i1 to vector<1x256xi1>
      %34 = vector.broadcast %33 : vector<1x256xi1> to vector<1x256xi1>
      %35 = arith.xori %31, %34 : vector<1x256xi1>
      %36 = arith.andi %35, %29 : vector<1x256xi1>
      %37 = vector.broadcast %25 : i32 to vector<1x256xi32>
      %38 = arith.addi %27, %37 : vector<1x256xi32>
      %39 = arith.select %36, %38, %27 : vector<1x256xi1>, vector<1x256xi32>
      %c15_i32 = arith.constant 15 : i32
      %40 = vector.broadcast %c15_i32 : i32 to vector<1x256xi32>
      %41 = arith.cmpi ne, %39, %40 : vector<1x256xi32>
      %c0_19 = arith.constant 0 : index
      %c0_20 = arith.constant 0 : index
      %42 = vector.load %arg5[%c0_19, %c0_20] : memref<8x256xf32, #tpu.memory_space<vmem>>, vector<8x256xf32>
      %cst = arith.constant 0.000000e+00 : f32
      %43 = vector.shape_cast %23 : vector<1x256xi1> to vector<1x256xi1>
      %44 = vector.broadcast %43 : vector<1x256xi1> to vector<8x256xi1>
      %45 = vector.broadcast %cst : f32 to vector<8x256xf32>
      %46 = arith.select %44, %42, %45 : vector<8x256xi1>, vector<8x256xf32>
      %47 = vector.shape_cast %46 : vector<8x256xf32> to vector<1x8x256xf32>
      %cst_21 = arith.constant dense<0.000000e+00> : vector<1xf32>
      %48 = vector.multi_reduction <add>, %47, %cst_21 [1, 2] : vector<1x8x256xf32> to vector<1xf32>
      %49 = vector.shape_cast %48 : vector<1xf32> to vector<1x1x1xf32>
      %50 = vector.extract %49[0, 0, 0] : f32 from vector<1x1x1xf32>
      %c0_22 = arith.constant 0 : index
      %c0_23 = arith.constant 0 : index
      %51 = vector.load %arg6[%c0_22, %c0_23] : memref<8x256xf32, #tpu.memory_space<vmem>>, vector<8x256xf32>
      %cst_24 = arith.constant 0.000000e+00 : f32
      %52 = vector.shape_cast %41 : vector<1x256xi1> to vector<1x256xi1>
      %53 = vector.broadcast %52 : vector<1x256xi1> to vector<8x256xi1>
      %54 = vector.broadcast %cst_24 : f32 to vector<8x256xf32>
      %55 = arith.select %53, %51, %54 : vector<8x256xi1>, vector<8x256xf32>
      %56 = vector.shape_cast %55 : vector<8x256xf32> to vector<1x8x256xf32>
      %cst_25 = arith.constant dense<0.000000e+00> : vector<1xf32>
      %57 = vector.multi_reduction <add>, %56, %cst_25 [1, 2] : vector<1x8x256xf32> to vector<1xf32>
      %58 = vector.shape_cast %57 : vector<1xf32> to vector<1x1x1xf32>
      %59 = vector.extract %58[0, 0, 0] : f32 from vector<1x1x1xf32>
      %60 = arith.addf %50, %59 : f32
      %cst_26 = arith.constant 4.8828125E-4 : f32
      %61 = arith.mulf %60, %cst_26 : f32
      %62 = vector.broadcast %61 : f32 to vector<1x1x1xf32>
      %c0_27 = arith.constant 0 : index
      %c0_28 = arith.constant 0 : index
      %c0_29 = arith.constant 0 : index
      %63 = vector.load %arg4[%c0_27, %c0_28, %c0_29] : memref<1x1x1xf32, #tpu.memory_space<vmem>>, vector<1x1x1xf32>
      tpu.vector_store %arg4[%c0_27, %c0_28, %c0_29], %62 {strides = array<i32>} : memref<1x1x1xf32, #tpu.memory_space<vmem>>, vector<1x1x1xf32>,
    } else {
    }
    return
  }
  func.func @transform_0(%arg0: i32, %arg1: i32) -> (i32, i32) {
    %c1_i32 = arith.constant 1 : i32
    %0 = arith.muli %arg0, %c1_i32 : i32
    %1 = arith.addi %0, %arg1 : i32
    %c0_i32 = arith.constant 0 : i32
    %c0_i32_0 = arith.constant 0 : i32
    return %1, %c0_i32 : i32, i32
  }
  func.func @transform_1(%arg0: i32, %arg1: i32) -> (i32, i32) {
    %c1_i32 = arith.constant 1 : i32
    %0 = arith.muli %arg0, %c1_i32 : i32
    %1 = arith.addi %0, %arg1 : i32
    %c0_i32 = arith.constant 0 : i32
    %c0_i32_0 = arith.constant 0 : i32
    return %1, %c0_i32 : i32, i32
  }
  func.func @transform_2(%arg0: i32, %arg1: i32) -> (i32, i32, i32) {
    %c0_i32 = arith.constant 0 : i32
    %c0_i32_0 = arith.constant 0 : i32
    %c0_i32_1 = arith.constant 0 : i32
    return %arg0, %c0_i32, %c0_i32_0 : i32, i32, i32
  }
}

</mosaic_0001>

<llo_original>
// kernel: tpu_custom_call.1
$region0: #{tpu_custom_call.1}
  #allocation0 [shape = 'u32[]', space=smem, size = 0x4, offset = 0x4, fixed_abs, tag = 'smem constant byte address 0x4 - core index']
  #allocation1 [shape = 'u32[144,128]{1,0:T(1,128)}', space=vmem, size = 0x12000, scoped, tag = 'internal scratch']
  #allocation2 [shape = 'f32[8,256]{1,0:T(8,128)}', space=vmem, size = 0x2000, scoped, tag = 'scratch operand']
  #allocation3 [shape = 'f32[8,256]{1,0:T(8,128)}', space=vmem, size = 0x2000, scoped, tag = 'scratch operand']
  %s0 = inlined_call_operand.hbm [shape: f32[8,256], index: 0, kind: input, shape index: {}]
  %s1 = inlined_call_operand.hbm [shape: f32[8,256], index: 1, kind: input, shape index: {}]
  %s2 = inlined_call_operand.hbm [shape: f32[1,1,1], index: 2, kind: output, shape index: {}]
  %s3 = sld [smem:[#allocation0]]
  $region34: #{tpu_custom_call.1} parent=0
    _
  %s5 = ssub.s32 1, %s3
  %s6 = scalar_select 0, %s5, %s3
  $region1: #{tpu_custom_call.1} parent=0
    #allocation4 [shape = 'u8[8192]{0}', space=vmem, size = 0x2000, scoped, tag = 'input window, operand 0, single buffered']
    #allocation5 [shape = 's32[1]{0}', space=sflag, size = 0x4, scoped, tag = 'scoped memory for tpu_custom_call.1']
    #allocation6 [shape = 's32[1]{0}', space=sflag, size = 0x4, scoped, tag = 'scoped memory for tpu_custom_call.1']
    #allocation7 [shape = 'u8[8192]{0}', space=vmem, size = 0x2000, scoped, tag = 'input window, operand 1, single buffered']
    #allocation8 [shape = 's32[1]{0}', space=sflag, size = 0x4, scoped, tag = 'scoped memory for tpu_custom_call.1']
    #allocation9 [shape = 'u8[512]{0}', space=vmem, size = 0x400, scoped, tag = 'output window, operand 0, single buffered']
    %7 = vsyncpa [#allocation5], 0
    %8 = vsyncpa [#allocation8], 0
    %9 = vsyncpa [#allocation6], 0
    // Predicated region
    $region2: #{tpu_custom_call.1} parent=1 // pred_check
      _
    $region3: #{tpu_custom_call.1} parent=1 // pred_check_branch
      %11 = sbr.rel (0) target = $region5
    $region4: #{tpu_custom_call.1} parent=1 // pred_region
      %s12 = sadd.s32 0, 0
      %s14 = ssub.s32 256, 256
      %15 = vsyncadd [#allocation5], %s14
      %s16 = smul.addr %s12, 2
      %s17 = smul.addr %s16, 128
      %s18 = scalar_lea.hbm %s0, %s17
      %s20 = sshll.u32 [#allocation4], 4
      %s21 = int_to_ptr.vmem [resolvable:$true] %s20
      %23 = dma.hbm_to_vmem [thread:$0]  %s18, 256, %s21, [#allocation5]
    $region5: #{tpu_custom_call.1} parent=1 // pred_fallthru
      _
    // Predicated region
    $region6: #{tpu_custom_call.1} parent=1 // pred_check
      _
    $region7: #{tpu_custom_call.1} parent=1 // pred_check_branch
      %25 = sbr.rel (0) target = $region9
    $region8: #{tpu_custom_call.1} parent=1 // pred_region
      %s26 = sadd.s32 0, 0
      %s28 = ssub.s32 256, 256
      %29 = vsyncadd [#allocation8], %s28
      %s30 = smul.addr %s26, 2
      %s31 = smul.addr %s30, 128
      %s32 = scalar_lea.hbm %s1, %s31
      %s34 = sshll.u32 [#allocation7], 4
      %s35 = int_to_ptr.vmem [resolvable:$true] %s34
      %37 = dma.hbm_to_vmem [thread:$0]  %s32, 256, %s35, [#allocation8]
    $region9: #{tpu_custom_call.1} parent=1 // pred_fallthru
      _
    // Predicated region
    $region10: #{tpu_custom_call.1} parent=1 // pred_check
      _
    $region11: #{tpu_custom_call.1} parent=1 // pred_check_branch
      %39 = sbr.rel (0) target = $region13
    $region12: #{tpu_custom_call.1} parent=1 // pred_region
      %40 = dma.done [#allocation5], 256
    $region13: #{tpu_custom_call.1} parent=1 // pred_fallthru
      _
    // Predicated region
    $region14: #{tpu_custom_call.1} parent=1 // pred_check
      _
    $region15: #{tpu_custom_call.1} parent=1 // pred_check_branch
      %42 = sbr.rel (0) target = $region17
    $region16: #{tpu_custom_call.1} parent=1 // pred_region
      %43 = dma.done [#allocation8], 256
    $region17: #{tpu_custom_call.1} parent=1 // pred_fallthru
      _
    %s44 = sadd.s32 0, 0
    %s45 = sadd.s32 0, 0
    %p46 = scmp.eq.s32.totalorder 0, 0
    // Predicated region
    $region18: #{tpu_custom_call.1} parent=1 // pred_check
      %p47 = pneg %p46
    $region19: #{tpu_custom_call.1} parent=1 // pred_check_branch
      %49 = sbr.rel (%p47) target = $region21
    $region20: #{tpu_custom_call.1} parent=1 // pred_region
      %50 = vst [vmem:[#allocation2] sm:$0xff] 0.0
      %51 = vst [vmem:[#allocation2 + $0x8] sm:$0xff] 0.0
      %52 = vst [vmem:[#allocation3] sm:$0xff] 0.0
      %53 = vst [vmem:[#allocation3 + $0x8] sm:$0xff] 0.0
    $region21: #{tpu_custom_call.1} parent=1 // pred_fallthru
      _
    %v54 = vld [vmem:[#allocation4] sm:$0xff]
    %v55 = vld [vmem:[#allocation4 + $0x8] sm:$0xff]
    %v56 = vld [vmem:[#allocation7] sm:$0xff]
    %v57 = vld [vmem:[#allocation7 + $0x8] sm:$0xff]
    %v58 = vsub.f32 %v54, %v56
    %v59 = vsub.f32 %v55, %v57
    %60 = vrot.lane.b32.xlu0 %v58, 127
    %v61 = vpop.permute.xlu0 %60
    %62 = vrot.lane.b32.xlu0 %v59, 127
    %v63 = vpop.permute.xlu0 %62
    %v64 = vlaneseq
    %v65 = vand.u32 %v64, 127
    %vm66 = vcmp.lt.s32.totalorder %v65, 127
    %v67 = vsel %vm66, %v61, %v63
    %v68 = vsel %vm66, %v63, %v61
    %v69 = vsub.f32 %v67, %v58
    %v70 = vsub.f32 %v68, %v59
    %71 = vrot.lane.b32.xlu0 %v58, 112
    %v72 = vpop.permute.xlu0 %71
    %73 = vrot.lane.b32.xlu0 %v59, 112
    %v74 = vpop.permute.xlu0 %73
    %vm75 = vcmp.lt.s32.totalorder %v65, 112
    %v76 = vsel %vm75, %v72, %v74
    %v77 = vsel %vm75, %v74, %v72
    %v78 = vsub.f32 %v76, %v58
    %v79 = vsub.f32 %v77, %v59
    %v80 = vmul.f32 %v78, %v78
    %v81 = vmul.f32 %v79, %v79
    %v82 = vmul.f32 %v69, %v69
    %v83 = vmul.f32 %v70, %v70
    %v84 = vld [vmem:[#allocation2] sm:$0xff]
    %v85 = vld [vmem:[#allocation2 + $0x8] sm:$0xff]
    %v86 = vadd.f32 %v84, %v80
    %v87 = vadd.f32 %v85, %v81
    %88 = vst [vmem:[#allocation2] sm:$0xff] %v86
    %89 = vst [vmem:[#allocation2 + $0x8] sm:$0xff] %v87
    %v90 = vld [vmem:[#allocation3] sm:$0xff]
    %v91 = vld [vmem:[#allocation3 + $0x8] sm:$0xff]
    %v92 = vadd.f32 %v90, %v82
    %v93 = vadd.f32 %v91, %v83
    %94 = vst [vmem:[#allocation3] sm:$0xff] %v92
    %95 = vst [vmem:[#allocation3 + $0x8] sm:$0xff] %v93
    // Predicated region
    $region22: #{tpu_custom_call.1} parent=1 // pred_check
      %p96 = pneg %p46
    $region23: #{tpu_custom_call.1} parent=1 // pred_check_branch
      %98 = sbr.rel (%p96) target = $region25
    $region24: #{tpu_custom_call.1} parent=1 // pred_region
      %v99 = vadd.s32 %v65, 128
      %vm100 = vcmp.lt.s32.totalorder %v65, 240
      %vm101 = vcmp.lt.s32.totalorder %v99, 240
      %vm102 = vcmp.lt.s32.totalorder %v65, 0
      %v103 = vsub.s32 0, %v65
      %v104 = vsel %vm102, %v103, %v65
      %v105 = vshrl.u32 %v104, 4
      %v106 = vand.u32 %v104, 15
      %v107 = vsub.s32 0, %v106
      %v108 = vsel %vm102, %v107, %v106
      %vm109 = vcmp.lt.s32.totalorder %v99, 0
      %v110 = vsub.s32 0, %v99
      %v111 = vsel %vm109, %v110, %v99
      %v112 = vshrl.u32 %v111, 4
      %v113 = vand.u32 %v111, 15
      %v114 = vsub.s32 0, %v113
      %v115 = vsel %vm109, %v114, %v113
      %vm116 = vcmp.ne.s32.totalorder %v108, 0
      %vm117 = vcmp.ne.s32.totalorder %v115, 0
      %vm118 = vcmp.lt.s32.totalorder %v108, 0
      %vm119 = vcmp.lt.s32.totalorder %v115, 0
      %vm120 = vmand %vm118, %vm116
      %vm121 = vmand %vm119, %vm117
      %v122 = vadd.s32 %v108, 16
      %v123 = vadd.s32 %v115, 16
      %v124 = vsel %vm120, %v122, %v108
      %v125 = vsel %vm121, %v123, %v115
      %vm126 = vcmp.ne.s32.totalorder %v124, 15
      %vm127 = vcmp.ne.s32.totalorder %v125, 15
      %v128 = vld [vmem:[#allocation2] sm:$0xff]
      %v129 = vld [vmem:[#allocation2 + $0x8] sm:$0xff]
      %v130 = vsel %vm100, 1, 0
      %v131 = vsel %vm101, 1, 0
      %vm132 = vcmp.eq.s32.totalorder %v130, 1
      %vm133 = vcmp.eq.s32.totalorder %v131, 1
      %v134 = vsel %vm132, %v128, 0.0
      %v135 = vsel %vm133, %v129, 0.0
      %v136 = vadd.f32 %v134, %v135
      %137 = vadd.xlane.f32.xlu0 %v136
      %v138 = vpop.xlane.xlu0 %137
      %v139 = vrot.slane %v138, 4
      %v140 = vadd.f32 %v138, %v139
      %v141 = vrot.slane %v140, 2
      %v142 = vadd.f32 %v140, %v141
      %v143 = vrot.slane %v142, 1
      %v144 = vadd.f32 %v142, %v143
      %s145 = vtos %v144
      %v146 = vld [vmem:[#allocation3] sm:$0xff]
      %v147 = vld [vmem:[#allocation3 + $0x8] sm:$0xff]
      %v148 = vsel %vm126, 1, 0
      %v149 = vsel %vm127, 1, 0
      %vm150 = vcmp.eq.s32.totalorder %v148, 1
      %vm151 = vcmp.eq.s32.totalorder %v149, 1
      %v152 = vsel %vm150, %v146, 0.0
      %v153 = vsel %vm151, %v147, 0.0
      %v154 = vadd.f32 %v152, %v153
      %155 = vadd.xlane.f32.xlu0 %v154
      %v156 = vpop.xlane.xlu0 %155
      %v157 = vrot.slane %v156, 4
      %v158 = vadd.f32 %v156, %v157
      %v159 = vrot.slane %v158, 2
      %v160 = vadd.f32 %v158, %v159
      %v161 = vrot.slane %v160, 1
      %v162 = vadd.f32 %v160, %v161
      %s163 = vtos %v162
      %s164 = sadd.f32 %s145, %s163
      %s165 = smul.f32 %s164, 0.00048828125
      %v166 = vstv %s165
      %vm167 = vcmask 0
      %168 = vst.msk [vmem:[#allocation9] sm:$0x1] %vm167, %v166
    $region25: #{tpu_custom_call.1} parent=1 // pred_fallthru
      _
    // Predicated region
    $region26: #{tpu_custom_call.1} parent=1 // pred_check
      _
    $region27: #{tpu_custom_call.1} parent=1 // pred_check_branch
      %170 = sbr.rel (0) target = $region29
    $region28: #{tpu_custom_call.1} parent=1 // pred_region
      %s172 = ssub.s32 16, 16
      %173 = vsyncadd [#allocation6], %s172
      %s175 = sshll.u32 [#allocation9], 4
      %s176 = int_to_ptr.vmem [resolvable:$true] %s175
      %178 = dma.vmem_to_hbm [thread:$0]  %s176, 16, %s2, [#allocation6]
    $region29: #{tpu_custom_call.1} parent=1 // pred_fallthru
      _
    // Predicated region
    $region30: #{tpu_custom_call.1} parent=1 // pred_check
      _
    $region31: #{tpu_custom_call.1} parent=1 // pred_check_branch
      %180 = sbr.rel (0) target = $region33
    $region32: #{tpu_custom_call.1} parent=1 // pred_region
      %181 = dma.done [#allocation6], 16
    $region33: #{tpu_custom_call.1} parent=1 // pred_fallthru
      _
    %182 = vsyncpa [#allocation5], 1
    %183 = vsyncpa [#allocation8], 1
    %184 = vsyncpa [#allocation6], 1

</llo_original>
